<compile_context>
chip_gen: v5e
topology: v5e:2x2
jax: 0.10.0
libtpu: 0.0.40
codegen_flags: <defaults>
</compile_context>

<pallas_src>
import functools

import jax
import jax.numpy as jnp
from jax.experimental import pallas as pl
from jax.experimental.pallas import tpu as pltpu

BN_EPS = 1e-5
HIDDEN = 512
LANE = 128


def _round_up(x, m):
    return ((x + m - 1) // m) * m


def head_kernel(x_ref, w1a_ref, w1b_ref, b1_ref, w2_ref, b2_ref, o_ref):
    # x_ref: (TB, C, H*W)
    x = x_ref[...].astype(jnp.float32)

    # --- AdaptiveConcatPool2d (output size 1): max / mean over the lane axis ---
    mx = jnp.max(x, axis=-1)    # (TB, C)
    av = jnp.mean(x, axis=-1)   # (TB, C)

    # --- Mish: v * tanh(softplus(v)), numerically-stable softplus ---
    def mish(v):
        sp = jnp.maximum(v, 0.0) + jnp.log1p(jnp.exp(-jnp.abs(v)))
        return v * jnp.tanh(sp)

    mx = mish(mx)
    av = mish(av)

    # --- Flatten: no-op ((TB, 2C, 1, 1) -> (TB, 2C)) ---
    # --- BN1d(2C) folded into w1/b1; Dropout = identity (eval mode) ---
    # Split-weight form avoids the lane-axis concat([mx, av]); both dots
    # accumulate into the same f32 result.
    h = (jnp.dot(mx, w1a_ref[...], preferred_element_type=jnp.float32)
         + jnp.dot(av, w1b_ref[...], preferred_element_type=jnp.float32)
         + b1_ref[...])

    # --- Swish ---
    h = h * jax.nn.sigmoid(h)

    # --- BN1d(512) folded into w2/b2; Dropout = identity (eval mode) ---
    out = jnp.dot(h, w2_ref[...], preferred_element_type=jnp.float32) + b2_ref[...]
    o_ref[...] = out.astype(o_ref.dtype)


def fold_params(params, n_out):
    """Fold eval-mode BatchNorms into the Linear layers and pad the output lanes.

    Returns (w1a, w1b, b1f, w2p, b2p, n_pad):
      w1a/w1b : (C, 512)      top / bottom halves of the BN1-folded first Linear
      b1f     : (1, 512)
      w2p     : (512, n_pad)  BN2-folded second Linear, zero-padded to 128 lanes
      b2p     : (1, n_pad)
    """
    w1, b1, w2, b2, bn1, bn2 = params
    g1, be1, rm1, rv1 = bn1[0], bn1[1], bn1[2], bn1[3]
    g2, be2, rm2, rv2 = bn2[0], bn2[1], bn2[2], bn2[3]

    a1 = g1 * jax.lax.rsqrt(rv1 + BN_EPS)              # (2C,)
    w1f = w1 * a1[:, None]                             # (2C, 512)
    b1f = b1 + ((be1 - rm1 * a1) @ w1)[None, :]        # (1, 512)

    a2 = g2 * jax.lax.rsqrt(rv2 + BN_EPS)              # (512,)
    w2f = w2 * a2[:, None]                             # (512, n_out)
    b2f = b2 + ((be2 - rm2 * a2) @ w2)[None, :]        # (1, n_out)

    two_c = w1.shape[0]
    c = two_c // 2
    w1a = w1f[:c]      # weights hit by the max-pooled half
    w1b = w1f[c:]      # weights hit by the avg-pooled half

    n_pad = _round_up(max(n_out, 1), LANE)
    w2p = jnp.pad(w2f, ((0, 0), (0, n_pad - n_out)))
    b2p = jnp.pad(b2f, ((0, 0), (0, n_pad - n_out)))
    return w1a, w1b, b1f, w2p, b2p, n_pad


def _choose_tb(batch, c, hw, bytes_per_elem=4, tile_budget_bytes=4 * 1024 * 1024):
    """Rows per batch tile: MXU-friendly (<=128), multiple of 8, VMEM-bounded."""
    tb = 128
    while tb > 8 and tb * c * hw * bytes_per_elem > tile_budget_bytes:
        tb //= 2
    tb = min(tb, _round_up(max(batch, 1), 8))
    return max(tb, 8)


@functools.partial(jax.jit, static_argnames=("n_out",))
def head_forward(x_nchw, params, n_out):
    B, C, H, W = x_nchw.shape
    HW = H * W

    w1a, w1b, b1f, w2p, b2p, n_pad = fold_params(params, n_out)

    TB = _choose_tb(B, C, HW, bytes_per_elem=x_nchw.dtype.itemsize)
    B_pad = _round_up(B, TB)

    x3 = x_nchw.reshape(B, C, HW)                      # keep input dtype (bf16 ok)
    if B_pad != B:
        x3 = jnp.pad(x3, ((0, B_pad - B), (0, 0), (0, 0)))

    out = pl.pallas_call(
        head_kernel,
        out_shape=jax.ShapeDtypeStruct((B_pad, n_pad), jnp.float32),
        grid=(B_pad // TB,),
        in_specs=[
            pl.BlockSpec((TB, C, HW), lambda i: (i, 0, 0)),       # activations: tiled
            pl.BlockSpec((C, HIDDEN), lambda i: (0, 0)),          # weights: resident
            pl.BlockSpec((C, HIDDEN), lambda i: (0, 0)),
            pl.BlockSpec((1, HIDDEN), lambda i: (0, 0)),
            pl.BlockSpec((HIDDEN, n_pad), lambda i: (0, 0)),
            pl.BlockSpec((1, n_pad), lambda i: (0, 0)),
        ],
        out_specs=pl.BlockSpec((TB, n_pad), lambda i: (i, 0)),    # lane-dense output
        compiler_params=pltpu.CompilerParams(
            dimension_semantics=("parallel",)),                   # shard across TCs
    )(x3, w1a, w1b, b1f, w2p, b2p)

    return out[:B, :n_out]


def make_params(key, nc, n_out):
    """Deterministic synthetic parameters matching Head(nc, n) shapes."""
    ks = jax.random.split(key, 8)
    n_in1 = 2 * nc
    w1 = jax.random.normal(ks[0], (n_in1, HIDDEN), jnp.float32) * (1.0 / jnp.sqrt(n_in1))
    b1 = jax.random.normal(ks[1], (1, HIDDEN), jnp.float32) * 0.01
    w2 = jax.random.normal(ks[2], (HIDDEN, n_out), jnp.float32) * (1.0 / jnp.sqrt(HIDDEN))
    b2 = jax.random.normal(ks[3], (1, n_out), jnp.float32) * 0.01
    # BN params packed as rows: [gamma, beta, running_mean, running_var]
    bn1 = jnp.stack([
        1.0 + 0.1 * jax.random.normal(ks[4], (n_in1,), jnp.float32),
        0.05 * jax.random.normal(ks[5], (n_in1,), jnp.float32),
        0.1 * jax.random.normal(ks[6], (n_in1,), jnp.float32),
        1.0 + 0.1 * jnp.abs(jax.random.normal(ks[7], (n_in1,), jnp.float32)),
    ], axis=0)
    ks2 = jax.random.split(jax.random.fold_in(key, 123), 4)
    bn2 = jnp.stack([
        1.0 + 0.1 * jax.random.normal(ks2[0], (HIDDEN,), jnp.float32),
        0.05 * jax.random.normal(ks2[1], (HIDDEN,), jnp.float32),
        0.1 * jax.random.normal(ks2[2], (HIDDEN,), jnp.float32),
        1.0 + 0.1 * jnp.abs(jax.random.normal(ks2[3], (HIDDEN,), jnp.float32)),
    ], axis=0)
    return (w1, b1, w2, b2, bn1, bn2)


def head_reference(x_nchw, params):
    """Pure-JAX reference (unfolded BN, f32) for correctness checking."""
    w1, b1, w2, b2, bn1, bn2 = params
    B = x_nchw.shape[0]
    mx = jnp.max(x_nchw, axis=(2, 3))
    av = jnp.mean(x_nchw, axis=(2, 3))
    p = jnp.concatenate([mx, av], axis=1)
    p = p * jnp.tanh(jnp.log1p(jnp.exp(p)))                        # Mish
    p = (p - bn1[2]) / jnp.sqrt(bn1[3] + BN_EPS) * bn1[0] + bn1[1]  # BN1 (eval)
    h = p @ w1 + b1
    h = h * jax.nn.sigmoid(h)                                       # Swish
    h = (h - bn2[2]) / jnp.sqrt(bn2[3] + BN_EPS) * bn2[0] + bn2[1]  # BN2 (eval)
    return (h @ w2 + b2).reshape(B, -1)


if __name__ == "__main__":
    B, C, H, W = 2, 4, 16, 16     # nc = 4
    N_OUT = 8                      # n = 8

    key = jax.random.PRNGKey(0)
    kx, kp = jax.random.split(key)
    x = jax.random.normal(kx, (B, C, H, W), jnp.float32)
    params = make_params(kp, C, N_OUT)

    out = head_forward(x, params, N_OUT)
    out = jax.block_until_ready(out)

    ref = head_reference(x, params)
    assert out.shape == (B, N_OUT)
    assert jnp.allclose(out, ref, atol=1e-3, rtol=1e-3), "mismatch vs JAX reference"

    print("KERNEL_OK")
</pallas_src>

<mosaic_0001>
module attributes {stable_mosaic.version = 11 : i64} {
  func.func @head_kernel(%arg0: i32, %arg1: memref<8x4x256xf32, #tpu.memory_space<vmem>>, %arg2: memref<4x512xf32, #tpu.memory_space<vmem>>, %arg3: memref<4x512xf32, #tpu.memory_space<vmem>>, %arg4: memref<1x512xf32, #tpu.memory_space<vmem>>, %arg5: memref<512x128xf32, #tpu.memory_space<vmem>>, %arg6: memref<1x128xf32, #tpu.memory_space<vmem>>, %arg7: memref<8x128xf32, #tpu.memory_space<vmem>>) attributes {dimension_semantics = [#tpu.dimension_semantics<parallel>], iteration_bounds = array<i64: 1>, scalar_prefetch = 0 : i64, scratch_operands = 0 : i64, tpu.core_type = #tpu.core_type<tc>, window_params = [{transform_indices = @transform_0, window_bounds = array<i64: 8, 4, 256>}, {pipeline_mode = #tpu.pipeline_mode<synchronous>, transform_indices = @transform_1, window_bounds = array<i64: 4, 512>}, {pipeline_mode = #tpu.pipeline_mode<synchronous>, transform_indices = @transform_2, window_bounds = array<i64: 4, 512>}, {pipeline_mode = #tpu.pipeline_mode<synchronous>, transform_indices = @transform_3, window_bounds = array<i64: 1, 512>}, {pipeline_mode = #tpu.pipeline_mode<synchronous>, transform_indices = @transform_4, window_bounds = array<i64: 512, 128>}, {pipeline_mode = #tpu.pipeline_mode<synchronous>, transform_indices = @transform_5, window_bounds = array<i64: 1, 128>}, {transform_indices = @transform_6, window_bounds = array<i64: 8, 128>}]} {
    %c0 = arith.constant 0 : index
    %c0_0 = arith.constant 0 : index
    %c0_1 = arith.constant 0 : index
    %0 = vector.load %arg1[%c0, %c0_0, %c0_1] : memref<8x4x256xf32, #tpu.memory_space<vmem>>, vector<8x4x256xf32>
    %cst = arith.constant dense<0xFF800000> : vector<8x4xf32>
    %1 = vector.multi_reduction <maximumf>, %0, %cst [2] : vector<8x4x256xf32> to vector<8x4xf32>
    %cst_2 = arith.constant dense<0.000000e+00> : vector<8x4xf32>
    %2 = vector.multi_reduction <add>, %0, %cst_2 [2] : vector<8x4x256xf32> to vector<8x4xf32>
    %cst_3 = arith.constant 2.560000e+02 : f32
    %3 = vector.broadcast %cst_3 : f32 to vector<8x4xf32>
    %4 = arith.divf %2, %3 : vector<8x4xf32>
    %cst_4 = arith.constant 0.000000e+00 : f32
    %5 = vector.broadcast %cst_4 : f32 to vector<8x4xf32>
    %6 = arith.maximumf %1, %5 : vector<8x4xf32>
    %7 = math.absf %1 : vector<8x4xf32>
    %cst_5 = arith.constant 0.000000e+00 : f32
    %8 = vector.broadcast %cst_5 : f32 to vector<8x4xf32>
    %9 = arith.subf %8, %7 : vector<8x4xf32>
    %10 = math.exp %9 : vector<8x4xf32>
    %11 = math.log1p %10 : vector<8x4xf32>
    %12 = arith.addf %6, %11 : vector<8x4xf32>
    %13 = math.tanh %12 : vector<8x4xf32>
    %14 = arith.mulf %1, %13 : vector<8x4xf32>
    %cst_6 = arith.constant 0.000000e+00 : f32
    %15 = vector.broadcast %cst_6 : f32 to vector<8x4xf32>
    %16 = arith.maximumf %4, %15 : vector<8x4xf32>
    %17 = math.absf %4 : vector<8x4xf32>
    %cst_7 = arith.constant 0.000000e+00 : f32
    %18 = vector.broadcast %cst_7 : f32 to vector<8x4xf32>
    %19 = arith.subf %18, %17 : vector<8x4xf32>
    %20 = math.exp %19 : vector<8x4xf32>
    %21 = math.log1p %20 : vector<8x4xf32>
    %22 = arith.addf %16, %21 : vector<8x4xf32>
    %23 = math.tanh %22 : vector<8x4xf32>
    %24 = arith.mulf %4, %23 : vector<8x4xf32>
    %c0_8 = arith.constant 0 : index
    %c0_9 = arith.constant 0 : index
    %25 = vector.load %arg2[%c0_8, %c0_9] : memref<4x512xf32, #tpu.memory_space<vmem>>, vector<4x512xf32>
    %cst_10 = arith.constant dense<0.000000e+00> : vector<8x512xf32>
    %26 = tpu.matmul %14, %25, %cst_10 {dimension_numbers = #tpu.dot_dimension_numbers<[1], [0], [0], [1], [0, 0, 1, 1], [], []>} : vector<8x4xf32>, vector<4x512xf32>, vector<8x512xf32> -> vector<8x512xf32>
    %c0_11 = arith.constant 0 : index
    %c0_12 = arith.constant 0 : index
    %27 = vector.load %arg3[%c0_11, %c0_12] : memref<4x512xf32, #tpu.memory_space<vmem>>, vector<4x512xf32>
    %cst_13 = arith.constant dense<0.000000e+00> : vector<8x512xf32>
    %28 = tpu.matmul %24, %27, %cst_13 {dimension_numbers = #tpu.dot_dimension_numbers<[1], [0], [0], [1], [0, 0, 1, 1], [], []>} : vector<8x4xf32>, vector<4x512xf32>, vector<8x512xf32> -> vector<8x512xf32>
    %29 = arith.addf %26, %28 : vector<8x512xf32>
    %c0_14 = arith.constant 0 : index
    %c0_15 = arith.constant 0 : index
    %30 = vector.load %arg4[%c0_14, %c0_15] : memref<1x512xf32, #tpu.memory_space<vmem>>, vector<1x512xf32>
    %31 = vector.broadcast %30 : vector<1x512xf32> to vector<8x512xf32>
    %32 = arith.addf %29, %31 : vector<8x512xf32>
    %33 = arith.negf %32 : vector<8x512xf32>
    %34 = math.exp %33 : vector<8x512xf32>
    %cst_16 = arith.constant 1.000000e+00 : f32
    %35 = vector.broadcast %cst_16 : f32 to vector<8x512xf32>
    %36 = arith.addf %35, %34 : vector<8x512xf32>
    %37 = arith.divf %35, %36 : vector<8x512xf32>
    %38 = arith.mulf %32, %37 : vector<8x512xf32>
    %c0_17 = arith.constant 0 : index
    %c0_18 = arith.constant 0 : index
    %39 = vector.load %arg5[%c0_17, %c0_18] : memref<512x128xf32, #tpu.memory_space<vmem>>, vector<512x128xf32>
    %cst_19 = arith.constant dense<0.000000e+00> : vector<8x128xf32>
    %40 = tpu.matmul %38, %39, %cst_19 {dimension_numbers = #tpu.dot_dimension_numbers<[1], [0], [0], [1], [0, 0, 1, 1], [], []>} : vector<8x512xf32>, vector<512x128xf32>, vector<8x128xf32> -> vector<8x128xf32>
    %c0_20 = arith.constant 0 : index
    %c0_21 = arith.constant 0 : index
    %41 = vector.load %arg6[%c0_20, %c0_21] : memref<1x128xf32, #tpu.memory_space<vmem>>, vector<1x128xf32>
    %42 = vector.broadcast %41 : vector<1x128xf32> to vector<8x128xf32>
    %43 = arith.addf %40, %42 : vector<8x128xf32>
    %c0_22 = arith.constant 0 : index
    %c0_23 = arith.constant 0 : index
    %44 = vector.load %arg7[%c0_22, %c0_23] : memref<8x128xf32, #tpu.memory_space<vmem>>, vector<8x128xf32>
    tpu.vector_store %arg7[%c0_22, %c0_23], %43 {strides = array<i32>} : memref<8x128xf32, #tpu.memory_space<vmem>>, vector<8x128xf32>,
    return
  }
  func.func @transform_0(%arg0: i32) -> (i32, i32, i32) {
    %c0_i32 = arith.constant 0 : i32
    %c0_i32_0 = arith.constant 0 : i32
    %c0_i32_1 = arith.constant 0 : i32
    return %arg0, %c0_i32, %c0_i32_0 : i32, i32, i32
  }
  func.func @transform_1(%arg0: i32) -> (i32, i32) {
    %c0_i32 = arith.constant 0 : i32
    %c0_i32_0 = arith.constant 0 : i32
    %c0_i32_1 = arith.constant 0 : i32
    return %c0_i32, %c0_i32_0 : i32, i32
  }
  func.func @transform_2(%arg0: i32) -> (i32, i32) {
    %c0_i32 = arith.constant 0 : i32
    %c0_i32_0 = arith.constant 0 : i32
    %c0_i32_1 = arith.constant 0 : i32
    return %c0_i32, %c0_i32_0 : i32, i32
  }
  func.func @transform_3(%arg0: i32) -> (i32, i32) {
    %c0_i32 = arith.constant 0 : i32
    %c0_i32_0 = arith.constant 0 : i32
    %c0_i32_1 = arith.constant 0 : i32
    return %c0_i32, %c0_i32_0 : i32, i32
  }
  func.func @transform_4(%arg0: i32) -> (i32, i32) {
    %c0_i32 = arith.constant 0 : i32
    %c0_i32_0 = arith.constant 0 : i32
    %c0_i32_1 = arith.constant 0 : i32
    return %c0_i32, %c0_i32_0 : i32, i32
  }
  func.func @transform_5(%arg0: i32) -> (i32, i32) {
    %c0_i32 = arith.constant 0 : i32
    %c0_i32_0 = arith.constant 0 : i32
    %c0_i32_1 = arith.constant 0 : i32
    return %c0_i32, %c0_i32_0 : i32, i32
  }
  func.func @transform_6(%arg0: i32) -> (i32, i32) {
    %c0_i32 = arith.constant 0 : i32
    %c0_i32_0 = arith.constant 0 : i32
    return %arg0, %c0_i32 : i32, i32
  }
}

</mosaic_0001>

<llo_original>
// kernel: head_forward.1
$region0: #{head_forward.1}
  #allocation0 [shape = 'u32[]', space=smem, size = 0x4, offset = 0x4, fixed_abs, tag = 'smem constant byte address 0x4 - core index']
  #allocation1 [shape = 'u32[72,128]{1,0:T(1,128)}', space=vmem, size = 0x9000, scoped, tag = 'internal scratch']
  %s0 = inlined_call_operand.vmem [shape: f32[8,4,256], index: 0, kind: input, shape index: {}]
  %s1 = inlined_call_operand.vmem [shape: f32[4,512], index: 1, kind: input, shape index: {}]
  %s2 = inlined_call_operand.vmem [shape: f32[4,512], index: 2, kind: input, shape index: {}]
  %s3 = inlined_call_operand.vmem [shape: f32[1,512], index: 3, kind: input, shape index: {}]
  %s4 = inlined_call_operand.vmem [shape: f32[512,128], index: 4, kind: input, shape index: {}]
  %s5 = inlined_call_operand.vmem [shape: f32[1,128], index: 5, kind: input, shape index: {}]
  %s6 = inlined_call_operand.vmem [shape: f32[8,128], index: 6, kind: output, shape index: {}]
  %s7 = sld [smem:[#allocation0]]
  $region34: #{head_forward.1} parent=0
    _
  %s9 = ssub.s32 1, %s7
  %s10 = scalar_select 0, %s9, %s7
  // Predicated region
  $region2: #{head_forward.1} parent=0 // pred_check
    _
  $region3: #{head_forward.1} parent=0 // pred_check_branch
    %12 = sbr.rel (0) target = $region5
  $region4: #{head_forward.1} parent=0 // pred_region
    _
  $region5: #{head_forward.1} parent=0 // pred_fallthru
    _
  // Predicated region
  $region6: #{head_forward.1} parent=0 // pred_check
    _
  $region7: #{head_forward.1} parent=0 // pred_check_branch
    %14 = sbr.rel (0) target = $region9
  $region8: #{head_forward.1} parent=0 // pred_region
    _
  $region9: #{head_forward.1} parent=0 // pred_fallthru
    _
  // Predicated region
  $region10: #{head_forward.1} parent=0 // pred_check
    _
  $region11: #{head_forward.1} parent=0 // pred_check_branch
    %16 = sbr.rel (0) target = $region13
  $region12: #{head_forward.1} parent=0 // pred_region
    _
  $region13: #{head_forward.1} parent=0 // pred_fallthru
    _
  // Predicated region
  $region14: #{head_forward.1} parent=0 // pred_check
    _
  $region15: #{head_forward.1} parent=0 // pred_check_branch
    %18 = sbr.rel (0) target = $region17
  $region16: #{head_forward.1} parent=0 // pred_region
    _
  $region17: #{head_forward.1} parent=0 // pred_fallthru
    _
  // Predicated region
  $region18: #{head_forward.1} parent=0 // pred_check
    _
  $region19: #{head_forward.1} parent=0 // pred_check_branch
    %20 = sbr.rel (0) target = $region21
  $region20: #{head_forward.1} parent=0 // pred_region
    _
  $region21: #{head_forward.1} parent=0 // pred_fallthru
    _
  // Predicated region
  $region22: #{head_forward.1} parent=0 // pred_check
    _
  $region23: #{head_forward.1} parent=0 // pred_check_branch
    %22 = sbr.rel (0) target = $region25
  $region24: #{head_forward.1} parent=0 // pred_region
    _
  $region25: #{head_forward.1} parent=0 // pred_fallthru
    _
  %v23 = vld [vmem:[%s0] sm:$0xff]
  %v24 = vld [vmem:[%s0 + $0x8] sm:$0xff]
  %v25 = vld [vmem:[%s0 + $0x10] sm:$0xff]
  %v26 = vld [vmem:[%s0 + $0x18] sm:$0xff]
  %v27 = vld [vmem:[%s0 + $0x20] sm:$0xff]
  %v28 = vld [vmem:[%s0 + $0x28] sm:$0xff]
  %v29 = vld [vmem:[%s0 + $0x30] sm:$0xff]
  %v30 = vld [vmem:[%s0 + $0x38] sm:$0xff]
  %39 = vst [vmem:[#allocation1] ss:$2 sm:$0xff] %v23
  %v40 = vld.sshfl [vmem:[#allocation1] sm:$0xff pattern:$0x75316420]
  %v41 = vld.sshfl [vmem:[#allocation1 + $0x8] sm:$0xff pattern:$0x75316420]
  %s42 = scalar_lea.vmem [#allocation1], 16
  %43 = vst [vmem:[%s42] ss:$2 sm:$0xff] %v24
  %v44 = vld.sshfl [vmem:[#allocation1 + $0x10] sm:$0xff pattern:$0x75316420]
  %v45 = vld.sshfl [vmem:[#allocation1 + $0x18] sm:$0xff pattern:$0x75316420]
  %s46 = scalar_lea.vmem [#allocation1], 32
  %47 = vst [vmem:[%s46] ss:$2 sm:$0xff] %v25
  %v48 = vld.sshfl [vmem:[#allocation1 + $0x20] sm:$0xff pattern:$0x75316420]
  %v49 = vld.sshfl [vmem:[#allocation1 + $0x28] sm:$0xff pattern:$0x75316420]
  %s50 = scalar_lea.vmem [#allocation1], 48
  %51 = vst [vmem:[%s50] ss:$2 sm:$0xff] %v26
  %v52 = vld.sshfl [vmem:[#allocation1 + $0x30] sm:$0xff pattern:$0x75316420]
  %v53 = vld.sshfl [vmem:[#allocation1 + $0x38] sm:$0xff pattern:$0x75316420]
  %54 = vst [vmem:[#allocation1] ss:$2 sm:$0xff] %v27
  %v55 = vld.sshfl [vmem:[#allocation1] sm:$0xff pattern:$0x75316420]
  %v56 = vld.sshfl [vmem:[#allocation1 + $0x8] sm:$0xff pattern:$0x75316420]
  %57 = vst [vmem:[%s42] ss:$2 sm:$0xff] %v28
  %v58 = vld.sshfl [vmem:[#allocation1 + $0x10] sm:$0xff pattern:$0x75316420]
  %v59 = vld.sshfl [vmem:[#allocation1 + $0x18] sm:$0xff pattern:$0x75316420]
  %60 = vst [vmem:[%s46] ss:$2 sm:$0xff] %v29
  %v61 = vld.sshfl [vmem:[#allocation1 + $0x20] sm:$0xff pattern:$0x75316420]
  %v62 = vld.sshfl [vmem:[#allocation1 + $0x28] sm:$0xff pattern:$0x75316420]
  %63 = vst [vmem:[%s50] ss:$2 sm:$0xff] %v30
  %v64 = vld.sshfl [vmem:[#allocation1 + $0x30] sm:$0xff pattern:$0x75316420]
  %v65 = vld.sshfl [vmem:[#allocation1 + $0x38] sm:$0xff pattern:$0x75316420]
  %vm82 = vcmask 1043456
  %v83 = vsel %vm82, %v40, -inf
  %v84 = vsel %vm82, %v41, -inf
  %v85 = vmax.f32 %v83, %v84
  %86 = vmax.xlane.f32.xlu0 %v85
  %v87 = vpop.xlane.xlu0 %86
  %v88 = vsel %vm82, %v44, -inf
  %v89 = vsel %vm82, %v45, -inf
  %v90 = vmax.f32 %v88, %v89
  %91 = vmax.xlane.f32.xlu0 %v90
  %v92 = vpop.xlane.xlu0 %91
  %v93 = vsel %vm82, %v48, -inf
  %v94 = vsel %vm82, %v49, -inf
  %v95 = vmax.f32 %v93, %v94
  %96 = vmax.xlane.f32.xlu0 %v95
  %v97 = vpop.xlane.xlu0 %96
  %v98 = vsel %vm82, %v52, -inf
  %v99 = vsel %vm82, %v53, -inf
  %v100 = vmax.f32 %v98, %v99
  %101 = vmax.xlane.f32.xlu0 %v100
  %v102 = vpop.xlane.xlu0 %101
  %v103 = vsel %vm82, %v55, -inf
  %v104 = vsel %vm82, %v56, -inf
  %v105 = vmax.f32 %v103, %v104
  %106 = vmax.xlane.f32.xlu0 %v105
  %v107 = vpop.xlane.xlu0 %106
  %v108 = vsel %vm82, %v58, -inf
  %v109 = vsel %vm82, %v59, -inf
  %v110 = vmax.f32 %v108, %v109
  %111 = vmax.xlane.f32.xlu0 %v110
  %v112 = vpop.xlane.xlu0 %111
  %v113 = vsel %vm82, %v61, -inf
  %v114 = vsel %vm82, %v62, -inf
  %v115 = vmax.f32 %v113, %v114
  %116 = vmax.xlane.f32.xlu0 %v115
  %v117 = vpop.xlane.xlu0 %116
  %v118 = vsel %vm82, %v64, -inf
  %v119 = vsel %vm82, %v65, -inf
  %v120 = vmax.f32 %v118, %v119
  %121 = vmax.xlane.f32.xlu0 %v120
  %v122 = vpop.xlane.xlu0 %121
  %123 = vst [vmem:[#allocation1] ss:$2 sm:$0xff] %v23
  %v124 = vld.sshfl [vmem:[#allocation1] sm:$0xff pattern:$0x75316420]
  %v125 = vld.sshfl [vmem:[#allocation1 + $0x8] sm:$0xff pattern:$0x75316420]
  %s126 = scalar_lea.vmem [#allocation1], 16
  %127 = vst [vmem:[%s126] ss:$2 sm:$0xff] %v24
  %v128 = vld.sshfl [vmem:[#allocation1 + $0x10] sm:$0xff pattern:$0x75316420]
  %v129 = vld.sshfl [vmem:[#allocation1 + $0x18] sm:$0xff pattern:$0x75316420]
  %s130 = scalar_lea.vmem [#allocation1], 32
  %131 = vst [vmem:[%s130] ss:$2 sm:$0xff] %v25
  %v132 = vld.sshfl [vmem:[#allocation1 + $0x20] sm:$0xff pattern:$0x75316420]
  %v133 = vld.sshfl [vmem:[#allocation1 + $0x28] sm:$0xff pattern:$0x75316420]
  %s134 = scalar_lea.vmem [#allocation1], 48
  %135 = vst [vmem:[%s134] ss:$2 sm:$0xff] %v26
  %v136 = vld.sshfl [vmem:[#allocation1 + $0x30] sm:$0xff pattern:$0x75316420]
  %v137 = vld.sshfl [vmem:[#allocation1 + $0x38] sm:$0xff pattern:$0x75316420]
  %138 = vst [vmem:[#allocation1] ss:$2 sm:$0xff] %v27
  %v139 = vld.sshfl [vmem:[#allocation1] sm:$0xff pattern:$0x75316420]
  %v140 = vld.sshfl [vmem:[#allocation1 + $0x8] sm:$0xff pattern:$0x75316420]
  %141 = vst [vmem:[%s126] ss:$2 sm:$0xff] %v28
  %v142 = vld.sshfl [vmem:[#allocation1 + $0x10] sm:$0xff pattern:$0x75316420]
  %v143 = vld.sshfl [vmem:[#allocation1 + $0x18] sm:$0xff pattern:$0x75316420]
  %144 = vst [vmem:[%s130] ss:$2 sm:$0xff] %v29
  %v145 = vld.sshfl [vmem:[#allocation1 + $0x20] sm:$0xff pattern:$0x75316420]
  %v146 = vld.sshfl [vmem:[#allocation1 + $0x28] sm:$0xff pattern:$0x75316420]
  %147 = vst [vmem:[%s134] ss:$2 sm:$0xff] %v30
  %v148 = vld.sshfl [vmem:[#allocation1 + $0x30] sm:$0xff pattern:$0x75316420]
  %v149 = vld.sshfl [vmem:[#allocation1 + $0x38] sm:$0xff pattern:$0x75316420]
  %v166 = vsel %vm82, %v124, 0.0
  %v167 = vsel %vm82, %v125, 0.0
  %v168 = vadd.f32 %v166, %v167
  %169 = vadd.xlane.f32.xlu0 %v168
  %v170 = vpop.xlane.xlu0 %169
  %v171 = vsel %vm82, %v128, 0.0
  %v172 = vsel %vm82, %v129, 0.0
  %v173 = vadd.f32 %v171, %v172
  %174 = vadd.xlane.f32.xlu0 %v173
  %v175 = vpop.xlane.xlu0 %174
  %v176 = vsel %vm82, %v132, 0.0
  %v177 = vsel %vm82, %v133, 0.0
  %v178 = vadd.f32 %v176, %v177
  %179 = vadd.xlane.f32.xlu0 %v178
  %v180 = vpop.xlane.xlu0 %179
  %v181 = vsel %vm82, %v136, 0.0
  %v182 = vsel %vm82, %v137, 0.0
  %v183 = vadd.f32 %v181, %v182
  %184 = vadd.xlane.f32.xlu0 %v183
  %v185 = vpop.xlane.xlu0 %184
  %v186 = vsel %vm82, %v139, 0.0
  %v187 = vsel %vm82, %v140, 0.0
  %v188 = vadd.f32 %v186, %v187
  %189 = vadd.xlane.f32.xlu0 %v188
  %v190 = vpop.xlane.xlu0 %189
  %v191 = vsel %vm82, %v142, 0.0
  %v192 = vsel %vm82, %v143, 0.0
  %v193 = vadd.f32 %v191, %v192
  %194 = vadd.xlane.f32.xlu0 %v193
  %v195 = vpop.xlane.xlu0 %194
  %v196 = vsel %vm82, %v145, 0.0
  %v197 = vsel %vm82, %v146, 0.0
  %v198 = vadd.f32 %v196, %v197
  %199 = vadd.xlane.f32.xlu0 %v198
  %v200 = vpop.xlane.xlu0 %199
  %v201 = vsel %vm82, %v148, 0.0
  %v202 = vsel %vm82, %v149, 0.0
  %v203 = vadd.f32 %v201, %v202
  %204 = vadd.xlane.f32.xlu0 %v203
  %v205 = vpop.xlane.xlu0 %204
  %v206 = vrcp.pop 256.0
  %v207 = vmul.f32 256.0, %v206
  %v208 = vsub.f32 1.0, %v207
  %v209 = vmul.f32 %v206, %v208
  %v210 = vadd.f32 %v206, %v209
  %vm211 = vweird.f32 %v206
  %v212 = vsel %vm211, %v206, %v210
  %v213 = vmul.f32 %v170, %v212
  %v214 = vmul.f32 %v175, %v212
  %v215 = vmul.f32 %v180, %v212
  %v216 = vmul.f32 %v185, %v212
  %v217 = vmul.f32 %v190, %v212
  %v218 = vmul.f32 %v195, %v212
  %v219 = vmul.f32 %v200, %v212
  %v220 = vmul.f32 %v205, %v212
  %v221 = vmax.f32 %v87, 0.0
  %v222 = vmax.f32 %v92, 0.0
  %v223 = vmax.f32 %v97, 0.0
  %v224 = vmax.f32 %v102, 0.0
  %v225 = vmax.f32 %v107, 0.0
  %v226 = vmax.f32 %v112, 0.0
  %v227 = vmax.f32 %v117, 0.0
  %v228 = vmax.f32 %v122, 0.0
  %v229 = vand.u32 2147483647, %v87
  %v230 = vand.u32 2147483647, %v92
  %v231 = vand.u32 2147483647, %v97
  %v232 = vand.u32 2147483647, %v102
  %v233 = vand.u32 2147483647, %v107
  %v234 = vand.u32 2147483647, %v112
  %v235 = vand.u32 2147483647, %v117
  %v236 = vand.u32 2147483647, %v122
  %v237 = vsub.f32 0.0, %v229
  %v238 = vsub.f32 0.0, %v230
  %v239 = vsub.f32 0.0, %v231
  %v240 = vsub.f32 0.0, %v232
  %v241 = vsub.f32 0.0, %v233
  %v242 = vsub.f32 0.0, %v234
  %v243 = vsub.f32 0.0, %v235
  %v244 = vsub.f32 0.0, %v236
  %v245 = vmul.f32 %v237, 1.442695
  %v246 = vpow.pop %v245
  %v247 = vmul.f32 %v238, 1.442695
  %v248 = vpow.pop %v247
  %v249 = vmul.f32 %v239, 1.442695
  %v250 = vpow.pop %v249
  %v251 = vmul.f32 %v240, 1.442695
  %v252 = vpow.pop %v251
  %v253 = vmul.f32 %v241, 1.442695
  %v254 = vpow.pop %v253
  %v255 = vmul.f32 %v242, 1.442695
  %v256 = vpow.pop %v255
  %v257 = vmul.f32 %v243, 1.442695
  %v258 = vpow.pop %v257
  %v259 = vmul.f32 %v244, 1.442695
  %v260 = vpow.pop %v259
  %v261 = vadd.f32 %v246, 1.0
  %v262 = vlog2.pop %v261
  %v263 = vmul.f32 %v262, 0.6931472
  %v264 = vmul.f32 -0.5, %v246
  %v265 = vadd.f32 %v264, 1.0
  %v266 = vmul.f32 %v265, %v246
  %v267 = vand.u32 2147483647, %v246
  %vm268 = vcmp.lt.f32.partialorder %v267, 0.0004427343
  %v269 = vsel %vm268, %v266, %v263
  %v270 = vadd.f32 %v248, 1.0
  %v271 = vlog2.pop %v270
  %v272 = vmul.f32 %v271, 0.6931472
  %v273 = vmul.f32 -0.5, %v248
  %v274 = vadd.f32 %v273, 1.0
  %v275 = vmul.f32 %v274, %v248
  %v276 = vand.u32 2147483647, %v248
  %vm277 = vcmp.lt.f32.partialorder %v276, 0.0004427343
  %v278 = vsel %vm277, %v275, %v272
  %v279 = vadd.f32 %v250, 1.0
  %v280 = vlog2.pop %v279
  %v281 = vmul.f32 %v280, 0.6931472
  %v282 = vmul.f32 -0.5, %v250
  %v283 = vadd.f32 %v282, 1.0
  %v284 = vmul.f32 %v283, %v250
  %v285 = vand.u32 2147483647, %v250
  %vm286 = vcmp.lt.f32.partialorder %v285, 0.0004427343
  %v287 = vsel %vm286, %v284, %v281
  %v288 = vadd.f32 %v252, 1.0
  %v289 = vlog2.pop %v288
  %v290 = vmul.f32 %v289, 0.6931472
  %v291 = vmul.f32 -0.5, %v252
  %v292 = vadd.f32 %v291, 1.0
  %v293 = vmul.f32 %v292, %v252
  %v294 = vand.u32 2147483647, %v252
  %vm295 = vcmp.lt.f32.partialorder %v294, 0.0004427343
  %v296 = vsel %vm295, %v293, %v290
  %v297 = vadd.f32 %v254, 1.0
  %v298 = vlog2.pop %v297
  %v299 = vmul.f32 %v298, 0.6931472
  %v300 = vmul.f32 -0.5, %v254
  %v301 = vadd.f32 %v300, 1.0
  %v302 = vmul.f32 %v301, %v254
  %v303 = vand.u32 2147483647, %v254
  %vm304 = vcmp.lt.f32.partialorder %v303, 0.0004427343
  %v305 = vsel %vm304, %v302, %v299
  %v306 = vadd.f32 %v256, 1.0
  %v307 = vlog2.pop %v306
  %v308 = vmul.f32 %v307, 0.6931472
  %v309 = vmul.f32 -0.5, %v256
  %v310 = vadd.f32 %v309, 1.0
  %v311 = vmul.f32 %v310, %v256
  %v312 = vand.u32 2147483647, %v256
  %vm313 = vcmp.lt.f32.partialorder %v312, 0.0004427343
  %v314 = vsel %vm313, %v311, %v308
  %v315 = vadd.f32 %v258, 1.0
  %v316 = vlog2.pop %v315
  %v317 = vmul.f32 %v316, 0.6931472
  %v318 = vmul.f32 -0.5, %v258
  %v319 = vadd.f32 %v318, 1.0
  %v320 = vmul.f32 %v319, %v258
  %v321 = vand.u32 2147483647, %v258
  %vm322 = vcmp.lt.f32.partialorder %v321, 0.0004427343
  %v323 = vsel %vm322, %v320, %v317
  %v324 = vadd.f32 %v260, 1.0
  %v325 = vlog2.pop %v324
  %v326 = vmul.f32 %v325, 0.6931472
  %v327 = vmul.f32 -0.5, %v260
  %v328 = vadd.f32 %v327, 1.0
  %v329 = vmul.f32 %v328, %v260
  %v330 = vand.u32 2147483647, %v260
  %vm331 = vcmp.lt.f32.partialorder %v330, 0.0004427343
  %v332 = vsel %vm331, %v329, %v326
  %v333 = vadd.f32 %v221, %v269
  %v334 = vadd.f32 %v222, %v278
  %v335 = vadd.f32 %v223, %v287
  %v336 = vadd.f32 %v224, %v296
  %v337 = vadd.f32 %v225, %v305
  %v338 = vadd.f32 %v226, %v314
  %v339 = vadd.f32 %v227, %v323
  %v340 = vadd.f32 %v228, %v332
  %v341 = vtanh.pop %v333
  %v342 = vtanh.pop %v334
  %v343 = vtanh.pop %v335
  %v344 = vtanh.pop %v336
  %v345 = vtanh.pop %v337
  %v346 = vtanh.pop %v338
  %v347 = vtanh.pop %v339
  %v348 = vtanh.pop %v340
  %v349 = vmul.f32 %v87, %v341
  %v350 = vmul.f32 %v92, %v342
  %v351 = vmul.f32 %v97, %v343
  %v352 = vmul.f32 %v102, %v344
  %v353 = vmul.f32 %v107, %v345
  %v354 = vmul.f32 %v112, %v346
  %v355 = vmul.f32 %v117, %v347
  %v356 = vmul.f32 %v122, %v348
  %v357 = vmax.f32 %v213, 0.0
  %v358 = vmax.f32 %v214, 0.0
  %v359 = vmax.f32 %v215, 0.0
  %v360 = vmax.f32 %v216, 0.0
  %v361 = vmax.f32 %v217, 0.0
  %v362 = vmax.f32 %v218, 0.0
  %v363 = vmax.f32 %v219, 0.0
  %v364 = vmax.f32 %v220, 0.0
  %v365 = vand.u32 2147483647, %v213
  %v366 = vand.u32 2147483647, %v214
  %v367 = vand.u32 2147483647, %v215
  %v368 = vand.u32 2147483647, %v216
  %v369 = vand.u32 2147483647, %v217
  %v370 = vand.u32 2147483647, %v218
  %v371 = vand.u32 2147483647, %v219
  %v372 = vand.u32 2147483647, %v220
  %v373 = vsub.f32 0.0, %v365
  %v374 = vsub.f32 0.0, %v366
  %v375 = vsub.f32 0.0, %v367
  %v376 = vsub.f32 0.0, %v368
  %v377 = vsub.f32 0.0, %v369
  %v378 = vsub.f32 0.0, %v370
  %v379 = vsub.f32 0.0, %v371
  %v380 = vsub.f32 0.0, %v372
  %v381 = vmul.f32 %v373, 1.442695
  %v382 = vpow.pop %v381
  %v383 = vmul.f32 %v374, 1.442695
  %v384 = vpow.pop %v383
  %v385 = vmul.f32 %v375, 1.442695
  %v386 = vpow.pop %v385
  %v387 = vmul.f32 %v376, 1.442695
  %v388 = vpow.pop %v387
  %v389 = vmul.f32 %v377, 1.442695
  %v390 = vpow.pop %v389
  %v391 = vmul.f32 %v378, 1.442695
  %v392 = vpow.pop %v391
  %v393 = vmul.f32 %v379, 1.442695
  %v394 = vpow.pop %v393
  %v395 = vmul.f32 %v380, 1.442695
  %v396 = vpow.pop %v395
  %v397 = vadd.f32 %v382, 1.0
  %v398 = vlog2.pop %v397
  %v399 = vmul.f32 %v398, 0.6931472
  %v400 = vmul.f32 -0.5, %v382
  %v401 = vadd.f32 %v400, 1.0
  %v402 = vmul.f32 %v401, %v382
  %v403 = vand.u32 2147483647, %v382
  %vm404 = vcmp.lt.f32.partialorder %v403, 0.0004427343
  %v405 = vsel %vm404, %v402, %v399
  %v406 = vadd.f32 %v384, 1.0
  %v407 = vlog2.pop %v406
  %v408 = vmul.f32 %v407, 0.6931472
  %v409 = vmul.f32 -0.5, %v384
  %v410 = vadd.f32 %v409, 1.0
  %v411 = vmul.f32 %v410, %v384
  %v412 = vand.u32 2147483647, %v384
  %vm413 = vcmp.lt.f32.partialorder %v412, 0.0004427343
  %v414 = vsel %vm413, %v411, %v408
  %v415 = vadd.f32 %v386, 1.0
  %v416 = vlog2.pop %v415
  %v417 = vmul.f32 %v416, 0.6931472
  %v418 = vmul.f32 -0.5, %v386
  %v419 = vadd.f32 %v418, 1.0
  %v420 = vmul.f32 %v419, %v386
  %v421 = vand.u32 2147483647, %v386
  %vm422 = vcmp.lt.f32.partialorder %v421, 0.0004427343
  %v423 = vsel %vm422, %v420, %v417
  %v424 = vadd.f32 %v388, 1.0
  %v425 = vlog2.pop %v424
  %v426 = vmul.f32 %v425, 0.6931472
  %v427 = vmul.f32 -0.5, %v388
  %v428 = vadd.f32 %v427, 1.0
  %v429 = vmul.f32 %v428, %v388
  %v430 = vand.u32 2147483647, %v388
  %vm431 = vcmp.lt.f32.partialorder %v430, 0.0004427343
  %v432 = vsel %vm431, %v429, %v426
  %v433 = vadd.f32 %v390, 1.0
  %v434 = vlog2.pop %v433
  %v435 = vmul.f32 %v434, 0.6931472
  %v436 = vmul.f32 -0.5, %v390
  %v437 = vadd.f32 %v436, 1.0
  %v438 = vmul.f32 %v437, %v390
  %v439 = vand.u32 2147483647, %v390
  %vm440 = vcmp.lt.f32.partialorder %v439, 0.0004427343
  %v441 = vsel %vm440, %v438, %v435
  %v442 = vadd.f32 %v392, 1.0
  %v443 = vlog2.pop %v442
  %v444 = vmul.f32 %v443, 0.6931472
  %v445 = vmul.f32 -0.5, %v392
  %v446 = vadd.f32 %v445, 1.0
  %v447 = vmul.f32 %v446, %v392
  %v448 = vand.u32 2147483647, %v392
  %vm449 = vcmp.lt.f32.partialorder %v448, 0.0004427343
  %v450 = vsel %vm449, %v447, %v444
  %v451 = vadd.f32 %v394, 1.0
  %v452 = vlog2.pop %v451
  %v453 = vmul.f32 %v452, 0.6931472
  %v454 = vmul.f32 -0.5, %v394
  %v455 = vadd.f32 %v454, 1.0
  %v456 = vmul.f32 %v455, %v394
  %v457 = vand.u32 2147483647, %v394
  %vm458 = vcmp.lt.f32.partialorder %v457, 0.0004427343
  %v459 = vsel %vm458, %v456, %v453
  %v460 = vadd.f32 %v396, 1.0
  %v461 = vlog2.pop %v460
  %v462 = vmul.f32 %v461, 0.6931472
  %v463 = vmul.f32 -0.5, %v396
  %v464 = vadd.f32 %v463, 1.0
  %v465 = vmul.f32 %v464, %v396
  %v466 = vand.u32 2147483647, %v396
  %vm467 = vcmp.lt.f32.partialorder %v466, 0.0004427343
  %v468 = vsel %vm467, %v465, %v462
  %v469 = vadd.f32 %v357, %v405
  %v470 = vadd.f32 %v358, %v414
  %v471 = vadd.f32 %v359, %v423
  %v472 = vadd.f32 %v360, %v432
  %v473 = vadd.f32 %v361, %v441
  %v474 = vadd.f32 %v362, %v450
  %v475 = vadd.f32 %v363, %v459
  %v476 = vadd.f32 %v364, %v468
  %v477 = vtanh.pop %v469
  %v478 = vtanh.pop %v470
  %v479 = vtanh.pop %v471
  %v480 = vtanh.pop %v472
  %v481 = vtanh.pop %v473
  %v482 = vtanh.pop %v474
  %v483 = vtanh.pop %v475
  %v484 = vtanh.pop %v476
  %v485 = vmul.f32 %v213, %v477
  %v486 = vmul.f32 %v214, %v478
  %v487 = vmul.f32 %v215, %v479
  %v488 = vmul.f32 %v216, %v480
  %v489 = vmul.f32 %v217, %v481
  %v490 = vmul.f32 %v218, %v482
  %v491 = vmul.f32 %v219, %v483
  %v492 = vmul.f32 %v220, %v484
  %v493 = vld [vmem:[%s1] sm:$0xff]
  %v494 = vld [vmem:[%s1 + $0x8] sm:$0xff]
  %v495 = vld [vmem:[%s2] sm:$0xff]
  %v496 = vld [vmem:[%s2 + $0x8] sm:$0xff]
  %v505 = vlaneseq
  %v506 = vand.u32 %v505, 127
  %v507 = vperm.slane %v485, %v506
  %v508 = vperm.slane %v486, %v506
  %v509 = vperm.slane %v487, %v506
  %v510 = vperm.slane %v488, %v506
  %v511 = vperm.slane %v489, %v506
  %v512 = vperm.slane %v490, %v506
  %v513 = vperm.slane %v491, %v506
  %v514 = vperm.slane %v492, %v506
  %vm515 = vcmask 1041409
  %v516 = vsel %vm515, %v508, %v507
  %vm517 = vcmask 1042434
  %v518 = vsel %vm517, %v509, %v516
  %vm519 = vcmask 1043459
  %v520 = vsel %vm519, %v510, %v518
  %vm521 = vcmask 1044484
  %v522 = vsel %vm521, %v511, %v520
  %vm523 = vcmask 1045509
  %v524 = vsel %vm523, %v512, %v522
  %vm525 = vcmask 1046534
  %v526 = vsel %vm525, %v513, %v524
  %vm527 = vcmask 1047559
  %v528 = vsel %vm527, %v514, %v526
  %531 = vst [vmem:[#allocation1] ss:$2 sm:$0xff] %v495
  %s532 = scalar_lea.vmem [#allocation1], 16
  %533 = vst [vmem:[%s532] ss:$2 sm:$0xff] %v496
  %v534 = vld.sshfl [vmem:[#allocation1] sm:$0xff pattern:$0x75316420]
  %v535 = vld.sshfl [vmem:[#allocation1 + $0x8] sm:$0xff pattern:$0x75316420]
  %v536 = vld.sshfl [vmem:[#allocation1 + $0x10] sm:$0xff pattern:$0x75316420]
  %v537 = vld.sshfl [vmem:[#allocation1 + $0x18] sm:$0xff pattern:$0x75316420]
  %vm538 = vcmask 31744
  %v539 = vsel %vm538, %v528, 0
  %v541 = vsel %vm82, %v534, 0
  %v543 = vsel %vm82, %v535, 0
  %v545 = vsel %vm82, %v536, 0
  %v547 = vsel %vm82, %v537, 0
  %549 = vmatpush.msra.mxu0 0.0
  %550 = vmatpush.msra.mxu0 0.0
  %551 = vmatpush.msra.mxu0 0.0
  %552 = vmatpush.msra.mxu0 0.0
  %553 = vmatpush.msra.mxu0 0.0
  %554 = vmatpush.msra.mxu0 0.0
  %555 = vmatpush.msra.mxu0 0.0
  %556 = vmatpush.msra.mxu0 0.0
  %557 = vmatpush.msra.mxu0 0.0
  %558 = vmatpush.msra.mxu0 0.0
  %559 = vmatpush.msra.mxu0 0.0
  %560 = vmatpush.msra.mxu0 0.0
  %561 = vmatpush.msra.mxu0 0.0
  %562 = vmatpush.msra.mxu0 0.0
  %563 = vmatpush.msra.mxu0 0.0
  %564 = vmatpush.msra.mxu0 %v541
  %565 = vmatmul.f32.gmra.mxu0 %v539
  %v566 = vpop.f32.mrf.mxu0
  %v567 = vadd.f32 0.0, %v566
  %568 = vdwg.mxu0
  %569 = vmatpush.msra.mxu0 0.0
  %570 = vmatpush.msra.mxu0 0.0
  %571 = vmatpush.msra.mxu0 0.0
  %572 = vmatpush.msra.mxu0 0.0
  %573 = vmatpush.msra.mxu0 0.0
  %574 = vmatpush.msra.mxu0 0.0
  %575 = vmatpush.msra.mxu0 0.0
  %576 = vmatpush.msra.mxu0 0.0
  %577 = vmatpush.msra.mxu0 0.0
  %578 = vmatpush.msra.mxu0 0.0
  %579 = vmatpush.msra.mxu0 0.0
  %580 = vmatpush.msra.mxu0 0.0
  %581 = vmatpush.msra.mxu0 0.0
  %582 = vmatpush.msra.mxu0 0.0
  %583 = vmatpush.msra.mxu0 0.0
  %584 = vmatpush.msra.mxu0 %v543
  %585 = vmatmul.f32.gmra.mxu0 %v539
  %v586 = vpop.f32.mrf.mxu0
  %v587 = vadd.f32 0.0, %v586
  %588 = vdwg.mxu0
  %589 = vmatpush.msra.mxu0 0.0
  %590 = vmatpush.msra.mxu0 0.0
  %591 = vmatpush.msra.mxu0 0.0
  %592 = vmatpush.msra.mxu0 0.0
  %593 = vmatpush.msra.mxu0 0.0
  %594 = vmatpush.msra.mxu0 0.0
  %595 = vmatpush.msra.mxu0 0.0
  %596 = vmatpush.msra.mxu0 0.0
  %597 = vmatpush.msra.mxu0 0.0
  %598 = vmatpush.msra.mxu0 0.0
  %599 = vmatpush.msra.mxu0 0.0
  %600 = vmatpush.msra.mxu0 0.0
  %601 = vmatpush.msra.mxu0 0.0
  %602 = vmatpush.msra.mxu0 0.0
  %603 = vmatpush.msra.mxu0 0.0
  %604 = vmatpush.msra.mxu0 %v545
  %605 = vmatmul.f32.gmra.mxu0 %v539
  %v606 = vpop.f32.mrf.mxu0
  %v607 = vadd.f32 0.0, %v606
  %608 = vdwg.mxu0
  %609 = vmatpush.msra.mxu0 0.0
  %610 = vmatpush.msra.mxu0 0.0
  %611 = vmatpush.msra.mxu0 0.0
  %612 = vmatpush.msra.mxu0 0.0
  %613 = vmatpush.msra.mxu0 0.0
  %614 = vmatpush.msra.mxu0 0.0
  %615 = vmatpush.msra.mxu0 0.0
  %616 = vmatpush.msra.mxu0 0.0
  %617 = vmatpush.msra.mxu0 0.0
  %618 = vmatpush.msra.mxu0 0.0
  %619 = vmatpush.msra.mxu0 0.0
  %620 = vmatpush.msra.mxu0 0.0
  %621 = vmatpush.msra.mxu0 0.0
  %622 = vmatpush.msra.mxu0 0.0
  %623 = vmatpush.msra.mxu0 0.0
  %624 = vmatpush.msra.mxu0 %v547
  %625 = vmatmul.f32.gmra.mxu0 %v539
  %v626 = vpop.f32.mrf.mxu0
  %v627 = vadd.f32 0.0, %v626
  %628 = vdwg.mxu0
  %v637 = vperm.slane %v349, %v506
  %v638 = vperm.slane %v350, %v506
  %v639 = vperm.slane %v351, %v506
  %v640 = vperm.slane %v352, %v506
  %v641 = vperm.slane %v353, %v506
  %v642 = vperm.slane %v354, %v506
  %v643 = vperm.slane %v355, %v506
  %v644 = vperm.slane %v356, %v506
  %v645 = vsel %vm515, %v638, %v637
  %v646 = vsel %vm517, %v639, %v645
  %v647 = vsel %vm519, %v640, %v646
  %v648 = vsel %vm521, %v641, %v647
  %v649 = vsel %vm523, %v642, %v648
  %v650 = vsel %vm525, %v643, %v649
  %v651 = vsel %vm527, %v644, %v650
  %654 = vst [vmem:[#allocation1] ss:$2 sm:$0xff] %v493
  %s655 = scalar_lea.vmem [#allocation1], 16
  %656 = vst [vmem:[%s655] ss:$2 sm:$0xff] %v494
  %v657 = vld.sshfl [vmem:[#allocation1] sm:$0xff pattern:$0x75316420]
  %v658 = vld.sshfl [vmem:[#allocation1 + $0x8] sm:$0xff pattern:$0x75316420]
  %v659 = vld.sshfl [vmem:[#allocation1 + $0x10] sm:$0xff pattern:$0x75316420]
  %v660 = vld.sshfl [vmem:[#allocation1 + $0x18] sm:$0xff pattern:$0x75316420]
  %v661 = vsel %vm538, %v651, 0
  %v663 = vsel %vm82, %v657, 0
  %v665 = vsel %vm82, %v658, 0
  %v667 = vsel %vm82, %v659, 0
  %v669 = vsel %vm82, %v660, 0
  %671 = vmatpush.msra.mxu0 0.0
  %672 = vmatpush.msra.mxu0 0.0
  %673 = vmatpush.msra.mxu0 0.0
  %674 = vmatpush.msra.mxu0 0.0
  %675 = vmatpush.msra.mxu0 0.0
  %676 = vmatpush.msra.mxu0 0.0
  %677 = vmatpush.msra.mxu0 0.0
  %678 = vmatpush.msra.mxu0 0.0
  %679 = vmatpush.msra.mxu0 0.0
  %680 = vmatpush.msra.mxu0 0.0
  %681 = vmatpush.msra.mxu0 0.0
  %682 = vmatpush.msra.mxu0 0.0
  %683 = vmatpush.msra.mxu0 0.0
  %684 = vmatpush.msra.mxu0 0.0
  %685 = vmatpush.msra.mxu0 0.0
  %686 = vmatpush.msra.mxu0 %v663
  %687 = vmatmul.f32.gmra.mxu0 %v661
  %v688 = vpop.f32.mrf.mxu0
  %v689 = vadd.f32 %v567, %v688
  %690 = vdwg.mxu0
  %691 = vmatpush.msra.mxu0 0.0
  %692 = vmatpush.msra.mxu0 0.0
  %693 = vmatpush.msra.mxu0 0.0
  %694 = vmatpush.msra.mxu0 0.0
  %695 = vmatpush.msra.mxu0 0.0
  %696 = vmatpush.msra.mxu0 0.0
  %697 = vmatpush.msra.mxu0 0.0
  %698 = vmatpush.msra.mxu0 0.0
  %699 = vmatpush.msra.mxu0 0.0
  %700 = vmatpush.msra.mxu0 0.0
  %701 = vmatpush.msra.mxu0 0.0
  %702 = vmatpush.msra.mxu0 0.0
  %703 = vmatpush.msra.mxu0 0.0
  %704 = vmatpush.msra.mxu0 0.0
  %705 = vmatpush.msra.mxu0 0.0
  %706 = vmatpush.msra.mxu0 %v665
  %707 = vmatmul.f32.gmra.mxu0 %v661
  %v708 = vpop.f32.mrf.mxu0
  %v709 = vadd.f32 %v587, %v708
  %710 = vdwg.mxu0
  %711 = vmatpush.msra.mxu0 0.0
  %712 = vmatpush.msra.mxu0 0.0
  %713 = vmatpush.msra.mxu0 0.0
  %714 = vmatpush.msra.mxu0 0.0
  %715 = vmatpush.msra.mxu0 0.0
  %716 = vmatpush.msra.mxu0 0.0
  %717 = vmatpush.msra.mxu0 0.0
  %718 = vmatpush.msra.mxu0 0.0
  %719 = vmatpush.msra.mxu0 0.0
  %720 = vmatpush.msra.mxu0 0.0
  %721 = vmatpush.msra.mxu0 0.0
  %722 = vmatpush.msra.mxu0 0.0
  %723 = vmatpush.msra.mxu0 0.0
  %724 = vmatpush.msra.mxu0 0.0
  %725 = vmatpush.msra.mxu0 0.0
  %726 = vmatpush.msra.mxu0 %v667
  %727 = vmatmul.f32.gmra.mxu0 %v661
  %v728 = vpop.f32.mrf.mxu0
  %v729 = vadd.f32 %v607, %v728
  %730 = vdwg.mxu0
  %731 = vmatpush.msra.mxu0 0.0
  %732 = vmatpush.msra.mxu0 0.0
  %733 = vmatpush.msra.mxu0 0.0
  %734 = vmatpush.msra.mxu0 0.0
  %735 = vmatpush.msra.mxu0 0.0
  %736 = vmatpush.msra.mxu0 0.0
  %737 = vmatpush.msra.mxu0 0.0
  %738 = vmatpush.msra.mxu0 0.0
  %739 = vmatpush.msra.mxu0 0.0
  %740 = vmatpush.msra.mxu0 0.0
  %741 = vmatpush.msra.mxu0 0.0
  %742 = vmatpush.msra.mxu0 0.0
  %743 = vmatpush.msra.mxu0 0.0
  %744 = vmatpush.msra.mxu0 0.0
  %745 = vmatpush.msra.mxu0 0.0
  %746 = vmatpush.msra.mxu0 %v669
  %747 = vmatmul.f32.gmra.mxu0 %v661
  %v748 = vpop.f32.mrf.mxu0
  %v749 = vadd.f32 %v627, %v748
  %750 = vdwg.mxu0
  %v751 = vld [vmem:[%s3] sm:$0xf]
  %v753 = vperm.slane %v751, 0
  %v754 = vperm.slane %v751, 1
  %v755 = vperm.slane %v751, 2
  %v756 = vperm.slane %v751, 3
  %v761 = vadd.f32 %v689, %v753
  %v762 = vadd.f32 %v709, %v754
  %v763 = vadd.f32 %v729, %v755
  %v764 = vadd.f32 %v749, %v756
  %v765 = vxor.u32 %v761, 2147483648
  %v766 = vxor.u32 %v762, 2147483648
  %v767 = vxor.u32 %v763, 2147483648
  %v768 = vxor.u32 %v764, 2147483648
  %v769 = vmul.f32 %v765, 1.442695
  %v770 = vpow.pop %v769
  %v771 = vmul.f32 %v766, 1.442695
  %v772 = vpow.pop %v771
  %v773 = vmul.f32 %v767, 1.442695
  %v774 = vpow.pop %v773
  %v775 = vmul.f32 %v768, 1.442695
  %v776 = vpow.pop %v775
  %v777 = vadd.f32 %v770, 1.0
  %v778 = vadd.f32 %v772, 1.0
  %v779 = vadd.f32 %v774, 1.0
  %v780 = vadd.f32 %v776, 1.0
  %v781 = vrcp.pop %v777
  %v782 = vmul.f32 %v777, %v781
  %v783 = vsub.f32 1.0, %v782
  %v784 = vmul.f32 %v781, %v783
  %v785 = vadd.f32 %v781, %v784
  %vm786 = vweird.f32 %v777
  %vm787 = vweird.f32 %v781
  %vm788 = vmor %vm786, %vm787
  %v789 = vsel %vm788, %v781, %v785
  %v790 = vand.u32 2147483647, %v777
  %vm791 = vcmp.eq.f32.partialorder %v790, 8.507059e+37
  %v792 = vand.u32 %v777, 2147483648
  %v793 = vor.u32 1.1754944e-38, %v792
  %v794 = vsel %vm791, %v793, %v789
  %v795 = vmul.f32 1.0, %v794
  %v796 = vrcp.pop %v778
  %v797 = vmul.f32 %v778, %v796
  %v798 = vsub.f32 1.0, %v797
  %v799 = vmul.f32 %v796, %v798
  %v800 = vadd.f32 %v796, %v799
  %vm801 = vweird.f32 %v778
  %vm802 = vweird.f32 %v796
  %vm803 = vmor %vm801, %vm802
  %v804 = vsel %vm803, %v796, %v800
  %v805 = vand.u32 2147483647, %v778
  %vm806 = vcmp.eq.f32.partialorder %v805, 8.507059e+37
  %v807 = vand.u32 %v778, 2147483648
  %v808 = vor.u32 1.1754944e-38, %v807
  %v809 = vsel %vm806, %v808, %v804
  %v810 = vmul.f32 1.0, %v809
  %v811 = vrcp.pop %v779
  %v812 = vmul.f32 %v779, %v811
  %v813 = vsub.f32 1.0, %v812
  %v814 = vmul.f32 %v811, %v813
  %v815 = vadd.f32 %v811, %v814
  %vm816 = vweird.f32 %v779
  %vm817 = vweird.f32 %v811
  %vm818 = vmor %vm816, %vm817
  %v819 = vsel %vm818, %v811, %v815
  %v820 = vand.u32 2147483647, %v779
  %vm821 = vcmp.eq.f32.partialorder %v820, 8.507059e+37
  %v822 = vand.u32 %v779, 2147483648
  %v823 = vor.u32 1.1754944e-38, %v822
  %v824 = vsel %vm821, %v823, %v819
  %v825 = vmul.f32 1.0, %v824
  %v826 = vrcp.pop %v780
  %v827 = vmul.f32 %v780, %v826
  %v828 = vsub.f32 1.0, %v827
  %v829 = vmul.f32 %v826, %v828
  %v830 = vadd.f32 %v826, %v829
  %vm831 = vweird.f32 %v780
  %vm832 = vweird.f32 %v826
  %vm833 = vmor %vm831, %vm832
  %v834 = vsel %vm833, %v826, %v830
  %v835 = vand.u32 2147483647, %v780
  %vm836 = vcmp.eq.f32.partialorder %v835, 8.507059e+37
  %v837 = vand.u32 %v780, 2147483648
  %v838 = vor.u32 1.1754944e-38, %v837
  %v839 = vsel %vm836, %v838, %v834
  %v840 = vmul.f32 1.0, %v839
  %v841 = vmul.f32 %v761, %v795
  %v842 = vmul.f32 %v762, %v810
  %v843 = vmul.f32 %v763, %v825
  %v844 = vmul.f32 %v764, %v840
  %v845 = vld [vmem:[%s4] sm:$0xff]
  %v846 = vld [vmem:[%s4 + $0x8] sm:$0xff]
  %v847 = vld [vmem:[%s4 + $0x10] sm:$0xff]
  %v848 = vld [vmem:[%s4 + $0x18] sm:$0xff]
  %v849 = vld [vmem:[%s4 + $0x20] sm:$0xff]
  %v850 = vld [vmem:[%s4 + $0x28] sm:$0xff]
  %v851 = vld [vmem:[%s4 + $0x30] sm:$0xff]
  %v852 = vld [vmem:[%s4 + $0x38] sm:$0xff]
  %v853 = vld [vmem:[%s4 + $0x40] sm:$0xff]
  %v854 = vld [vmem:[%s4 + $0x48] sm:$0xff]
  %v855 = vld [vmem:[%s4 + $0x50] sm:$0xff]
  %v856 = vld [vmem:[%s4 + $0x58] sm:$0xff]
  %v857 = vld [vmem:[%s4 + $0x60] sm:$0xff]
  %v858 = vld [vmem:[%s4 + $0x68] sm:$0xff]
  %v859 = vld [vmem:[%s4 + $0x70] sm:$0xff]
  %v860 = vld [vmem:[%s4 + $0x78] sm:$0xff]
  %v861 = vld [vmem:[%s4 + $0x80] sm:$0xff]
  %v862 = vld [vmem:[%s4 + $0x88] sm:$0xff]
  %v863 = vld [vmem:[%s4 + $0x90] sm:$0xff]
  %v864 = vld [vmem:[%s4 + $0x98] sm:$0xff]
  %v865 = vld [vmem:[%s4 + $0xa0] sm:$0xff]
  %v866 = vld [vmem:[%s4 + $0xa8] sm:$0xff]
  %v867 = vld [vmem:[%s4 + $0xb0] sm:$0xff]
  %v868 = vld [vmem:[%s4 + $0xb8] sm:$0xff]
  %v869 = vld [vmem:[%s4 + $0xc0] sm:$0xff]
  %v870 = vld [vmem:[%s4 + $0xc8] sm:$0xff]
  %v871 = vld [vmem:[%s4 + $0xd0] sm:$0xff]
  %v872 = vld [vmem:[%s4 + $0xd8] sm:$0xff]
  %v873 = vld [vmem:[%s4 + $0xe0] sm:$0xff]
  %v874 = vld [vmem:[%s4 + $0xe8] sm:$0xff]
  %v875 = vld [vmem:[%s4 + $0xf0] sm:$0xff]
  %v876 = vld [vmem:[%s4 + $0xf8] sm:$0xff]
  %v877 = vld [vmem:[%s4 + $0x100] sm:$0xff]
  %v878 = vld [vmem:[%s4 + $0x108] sm:$0xff]
  %v879 = vld [vmem:[%s4 + $0x110] sm:$0xff]
  %v880 = vld [vmem:[%s4 + $0x118] sm:$0xff]
  %v881 = vld [vmem:[%s4 + $0x120] sm:$0xff]
  %v882 = vld [vmem:[%s4 + $0x128] sm:$0xff]
  %v883 = vld [vmem:[%s4 + $0x130] sm:$0xff]
  %v884 = vld [vmem:[%s4 + $0x138] sm:$0xff]
  %v885 = vld [vmem:[%s4 + $0x140] sm:$0xff]
  %v886 = vld [vmem:[%s4 + $0x148] sm:$0xff]
  %v887 = vld [vmem:[%s4 + $0x150] sm:$0xff]
  %v888 = vld [vmem:[%s4 + $0x158] sm:$0xff]
  %v889 = vld [vmem:[%s4 + $0x160] sm:$0xff]
  %v890 = vld [vmem:[%s4 + $0x168] sm:$0xff]
  %v891 = vld [vmem:[%s4 + $0x170] sm:$0xff]
  %v892 = vld [vmem:[%s4 + $0x178] sm:$0xff]
  %v893 = vld [vmem:[%s4 + $0x180] sm:$0xff]
  %v894 = vld [vmem:[%s4 + $0x188] sm:$0xff]
  %v895 = vld [vmem:[%s4 + $0x190] sm:$0xff]
  %v896 = vld [vmem:[%s4 + $0x198] sm:$0xff]
  %v897 = vld [vmem:[%s4 + $0x1a0] sm:$0xff]
  %v898 = vld [vmem:[%s4 + $0x1a8] sm:$0xff]
  %v899 = vld [vmem:[%s4 + $0x1b0] sm:$0xff]
  %v900 = vld [vmem:[%s4 + $0x1b8] sm:$0xff]
  %v901 = vld [vmem:[%s4 + $0x1c0] sm:$0xff]
  %v902 = vld [vmem:[%s4 + $0x1c8] sm:$0xff]
  %v903 = vld [vmem:[%s4 + $0x1d0] sm:$0xff]
  %v904 = vld [vmem:[%s4 + $0x1d8] sm:$0xff]
  %v905 = vld [vmem:[%s4 + $0x1e0] sm:$0xff]
  %v906 = vld [vmem:[%s4 + $0x1e8] sm:$0xff]
  %v907 = vld [vmem:[%s4 + $0x1f0] sm:$0xff]
  %v908 = vld [vmem:[%s4 + $0x1f8] sm:$0xff]
  %v909 = vld [vmem:[%s5] sm:$0x1]
  %v911 = vperm.slane %v909, 0
  %913 = vmatpush.msra.mxu0 %v860
  %914 = vmatpush.msra.mxu0 %v859
  %915 = vmatpush.msra.mxu0 %v858
  %916 = vmatpush.msra.mxu0 %v857
  %917 = vmatpush.msra.mxu0 %v856
  %918 = vmatpush.msra.mxu0 %v855
  %919 = vmatpush.msra.mxu0 %v854
  %920 = vmatpush.msra.mxu0 %v853
  %921 = vmatpush.msra.mxu0 %v852
  %922 = vmatpush.msra.mxu0 %v851
  %923 = vmatpush.msra.mxu0 %v850
  %924 = vmatpush.msra.mxu0 %v849
  %925 = vmatpush.msra.mxu0 %v848
  %926 = vmatpush.msra.mxu0 %v847
  %927 = vmatpush.msra.mxu0 %v846
  %928 = vmatpush.msra.mxu0 %v845
  %929 = vmatmul.f32.gmra.mxu0 %v841
  %v930 = vpop.f32.mrf.mxu0
  %v931 = vadd.f32 %v911, %v930
  %932 = vdwg.mxu0
  %933 = vmatpush.msra.mxu0 %v876
  %934 = vmatpush.msra.mxu0 %v875
  %935 = vmatpush.msra.mxu0 %v874
  %936 = vmatpush.msra.mxu0 %v873
  %937 = vmatpush.msra.mxu0 %v872
  %938 = vmatpush.msra.mxu0 %v871
  %939 = vmatpush.msra.mxu0 %v870
  %940 = vmatpush.msra.mxu0 %v869
  %941 = vmatpush.msra.mxu0 %v868
  %942 = vmatpush.msra.mxu0 %v867
  %943 = vmatpush.msra.mxu0 %v866
  %944 = vmatpush.msra.mxu0 %v865
  %945 = vmatpush.msra.mxu0 %v864
  %946 = vmatpush.msra.mxu0 %v863
  %947 = vmatpush.msra.mxu0 %v862
  %948 = vmatpush.msra.mxu0 %v861
  %949 = vmatmul.f32.gmra.mxu0 %v842
  %v950 = vpop.f32.mrf.mxu0
  %v951 = vadd.f32 %v931, %v950
  %952 = vdwg.mxu0
  %953 = vmatpush.msra.mxu0 %v892
  %954 = vmatpush.msra.mxu0 %v891
  %955 = vmatpush.msra.mxu0 %v890
  %956 = vmatpush.msra.mxu0 %v889
  %957 = vmatpush.msra.mxu0 %v888
  %958 = vmatpush.msra.mxu0 %v887
  %959 = vmatpush.msra.mxu0 %v886
  %960 = vmatpush.msra.mxu0 %v885
  %961 = vmatpush.msra.mxu0 %v884
  %962 = vmatpush.msra.mxu0 %v883
  %963 = vmatpush.msra.mxu0 %v882
  %964 = vmatpush.msra.mxu0 %v881
  %965 = vmatpush.msra.mxu0 %v880
  %966 = vmatpush.msra.mxu0 %v879
  %967 = vmatpush.msra.mxu0 %v878
  %968 = vmatpush.msra.mxu0 %v877
  %969 = vmatmul.f32.gmra.mxu0 %v843
  %v970 = vpop.f32.mrf.mxu0
  %v971 = vadd.f32 %v951, %v970
  %972 = vdwg.mxu0
  %973 = vmatpush.msra.mxu0 %v908
  %974 = vmatpush.msra.mxu0 %v907
  %975 = vmatpush.msra.mxu0 %v906
  %976 = vmatpush.msra.mxu0 %v905
  %977 = vmatpush.msra.mxu0 %v904
  %978 = vmatpush.msra.mxu0 %v903
  %979 = vmatpush.msra.mxu0 %v902
  %980 = vmatpush.msra.mxu0 %v901
  %981 = vmatpush.msra.mxu0 %v900
  %982 = vmatpush.msra.mxu0 %v899
  %983 = vmatpush.msra.mxu0 %v898
  %984 = vmatpush.msra.mxu0 %v897
  %985 = vmatpush.msra.mxu0 %v896
  %986 = vmatpush.msra.mxu0 %v895
  %987 = vmatpush.msra.mxu0 %v894
  %988 = vmatpush.msra.mxu0 %v893
  %989 = vmatmul.f32.gmra.mxu0 %v844
  %v990 = vpop.f32.mrf.mxu0
  %v991 = vadd.f32 %v971, %v990
  %992 = vdwg.mxu0
  %993 = vst [vmem:[%s6] sm:$0xff] %v991
  // Predicated region
  $region26: #{head_forward.1} parent=0 // pred_check
    _
  $region27: #{head_forward.1} parent=0 // pred_check_branch
    %995 = sbr.rel (0) target = $region29
  $region28: #{head_forward.1} parent=0 // pred_region
    _
  $region29: #{head_forward.1} parent=0 // pred_fallthru
    _
  // Predicated region
  $region30: #{head_forward.1} parent=0 // pred_check
    _
  $region31: #{head_forward.1} parent=0 // pred_check_branch
    %997 = sbr.rel (0) target = $region33
  $region32: #{head_forward.1} parent=0 // pred_region
    _
  $region33: #{head_forward.1} parent=0 // pred_fallthru
    _

</llo_original>
